<compile_context>
chip_gen: v5e
topology: v5e:2x2
jax: 0.10.0
libtpu: 0.0.40
codegen_flags: <defaults>
</compile_context>

<pallas_src>
import functools

import jax
import jax.numpy as jnp
from jax.experimental import pallas as pl
from jax.experimental.pallas import tpu as pltpu

EPS = 1e-5


# ------------------------------ Pallas kernel --------------------------------
def _fused_double_conv_kernel(x_ref, w1_ref, w2_ref, g1_ref, be1_ref,
                              g2_ref, be2_ref, p_ref, out_ref,
                              *, N, H, W, Cin, C):
    """(conv3x3 -> BN(train) -> ReLU) x 2, fully 2-D / lane-dense, no scratch.

    x_ref  : (N*H, W*Cin)   f32   lane-dense input slab (NHWC rows)
    w1_ref : (3*W*Cin, W*C) bf16  width-banded conv1 weight; row block dy
                                  holds the taps for input row h + dy - 1
    w2_ref : (3*W*C, W*C)   bf16  width-banded conv2 weight
    g*/be* : (1, W*C)       f32   BN gamma / beta pre-tiled over lanes
    p_ref  : (W*C, W*C)     f32   channel-averaging projector P[l,l'] = [ch(l)==ch(l')]
    out_ref: (N*H, W*C)     f32   lane-dense output slab
    """
    NH = N * H
    K1 = W * Cin
    WC = W * C
    inv_n = 1.0 / float(N * H * W)

    # Row masks for the 3x3 height taps.  Zeroing the per-image top/bottom rows
    # implements the H zero-padding and also kills batch-seam / roll-wraparound
    # rows (the XLU rolls are circular).
    rows = jax.lax.broadcasted_iota(jnp.int32, (NH, 1), 0)
    if H & (H - 1) == 0:                               # power-of-two fast path
        h_idx = jnp.bitwise_and(rows, H - 1)
    else:
        h_idx = rows % H
    not_top = h_idx != 0                               # rows with a valid h-1 tap
    not_bot = h_idx != (H - 1)                         # rows with a valid h+1 tap

    def conv3(x32, w_ref, k):
        # x32: (NH, k) f32; w_ref: (3*k, WC) bf16.  Taps ride the XLU (roll)
        # and the three dots accumulate in f32 on the MXU.
        up = jnp.where(not_top, pltpu.roll(x32, shift=1, axis=0), 0.0)
        dn = jnp.where(not_bot, pltpu.roll(x32, shift=NH - 1, axis=0), 0.0)
        z = jnp.dot(up.astype(jnp.bfloat16), w_ref[0:k, :],
                    preferred_element_type=jnp.float32)
        z += jnp.dot(x32.astype(jnp.bfloat16), w_ref[k:2 * k, :],
                     preferred_element_type=jnp.float32)
        z += jnp.dot(dn.astype(jnp.bfloat16), w_ref[2 * k:3 * k, :],
                     preferred_element_type=jnp.float32)
        return z                                       # (NH, WC) f32

    def bn_relu(z, gamma_l, beta_l):
        # Per-channel batch stats in f32.  The projector P broadcasts the
        # channel reduction straight back to lane space, so scale/shift need
        # no extra broadcast dots and everything stays (1, WC) lane-dense.
        lane_sum = jnp.sum(z, axis=0, keepdims=True)                   # (1, WC)
        lane_ssq = jnp.sum(z * z, axis=0, keepdims=True)               # (1, WC)
        mean_l = jnp.dot(lane_sum, p_ref[...],
                         preferred_element_type=jnp.float32) * inv_n   # (1, WC)
        ex2_l = jnp.dot(lane_ssq, p_ref[...],
                        preferred_element_type=jnp.float32) * inv_n
        var_l = ex2_l - mean_l * mean_l                                # biased
        scale_l = gamma_l * jax.lax.rsqrt(var_l + EPS)
        shift_l = beta_l - mean_l * scale_l
        return jnp.maximum(z * scale_l + shift_l, 0.0)

    # ---- stage 1 ----
    x32 = x_ref[...]
    z1 = conv3(x32, w1_ref, K1)
    y1 = bn_relu(z1, g1_ref[...], be1_ref[...])
    # ---- stage 2 ----
    z2 = conv3(y1, w2_ref, WC)
    out_ref[...] = bn_relu(z2, g2_ref[...], be2_ref[...])


# ------------------------------ glue (wrapper) --------------------------------
def _width_banded_weight(w_hwio, W):
    """(3,3,Cin,Cout) -> (3*W*Cin, W*Cout):
    B[(dy, wi, ci), (wo, co)] = sum_dx w[dy,dx,ci,co] * [wi == wo + dx - 1]
    (zero padding in width is folded into the band boundaries)."""
    KH, KW, Cin, Cout = w_hwio.shape
    wi = jnp.arange(W)
    mask = (wi[None, :, None] ==
            wi[None, None, :] + jnp.arange(KW)[:, None, None] - 1)
    mask = mask.astype(w_hwio.dtype)                      # (KW, W, W)
    banded = jnp.einsum('yxio,xpw->ypiwo', w_hwio, mask)  # (3, W, Cin, W, Cout)
    return banded.reshape(KH * W * Cin, W * Cout)


def prepare_params(w1, b1, g1, be1, w2, b2, g2, be2, W):
    """Once-per-parameter-set prep (hoisted out of the per-call forward).

    Conv biases are accepted for API parity with the PyTorch module but are
    dropped: a per-channel constant added before training-mode BatchNorm
    cancels exactly in (z - mean) * rsqrt(var).
    """
    del b1, b2
    C = w1.shape[3]
    WC = W * C
    w1b = _width_banded_weight(w1, W).astype(jnp.bfloat16)   # (3*W*Cin, WC)
    w2b = _width_banded_weight(w2, W).astype(jnp.bfloat16)   # (3*WC,    WC)
    p = jnp.tile(jnp.eye(C, dtype=jnp.float32), (W, W))      # (WC, WC) projector
    g1l = jnp.tile(g1, W).reshape(1, WC)
    be1l = jnp.tile(be1, W).reshape(1, WC)
    g2l = jnp.tile(g2, W).reshape(1, WC)
    be2l = jnp.tile(be2, W).reshape(1, WC)
    return w1b, w2b, g1l, be1l, g2l, be2l, p


@jax.jit
def double_conv(x_nchw, params):
    """Double_conv_floor.forward: NCHW in -> NCHW out (layout work is glue)."""
    w1b, w2b, g1l, be1l, g2l, be2l, p = params
    N, Cin, H, W = x_nchw.shape
    WC = g1l.shape[1]
    C = WC // W
    NH, K1 = N * H, W * Cin

    x_slab = jnp.transpose(x_nchw, (0, 2, 3, 1)).reshape(NH, K1)   # lane-dense

    kernel = functools.partial(_fused_double_conv_kernel,
                               N=N, H=H, W=W, Cin=Cin, C=C)
    out2d = pl.pallas_call(
        kernel,
        out_shape=jax.ShapeDtypeStruct((NH, WC), jnp.float32),
        grid=(1,),
        in_specs=[
            pl.BlockSpec((NH, K1), lambda i: (0, 0)),           # x slab (f32)
            pl.BlockSpec((3 * K1, WC), lambda i: (0, 0)),       # w1 banded
            pl.BlockSpec((3 * WC, WC), lambda i: (0, 0)),       # w2 banded
            pl.BlockSpec((1, WC), lambda i: (0, 0)),            # gamma1 (lanes)
            pl.BlockSpec((1, WC), lambda i: (0, 0)),            # beta1
            pl.BlockSpec((1, WC), lambda i: (0, 0)),            # gamma2
            pl.BlockSpec((1, WC), lambda i: (0, 0)),            # beta2
            pl.BlockSpec((WC, WC), lambda i: (0, 0)),           # P projector
        ],
        out_specs=pl.BlockSpec((NH, WC), lambda i: (0, 0)),
    )(x_slab, w1b, w2b, g1l, be1l, g2l, be2l, p)

    return jnp.transpose(out2d.reshape(N, H, W, C), (0, 3, 1, 2))  # -> NCHW


# ----------------------------- pure-JAX reference -----------------------------
def _ref_stage(x_nhwc, w, b, g, be):
    z = jax.lax.conv_general_dilated(
        x_nhwc, w, window_strides=(1, 1), padding="SAME",
        dimension_numbers=("NHWC", "HWIO", "NHWC")) + b
    n = z.shape[0] * z.shape[1] * z.shape[2]
    mean = jnp.sum(z, axis=(0, 1, 2)) / n
    var = jnp.sum(z * z, axis=(0, 1, 2)) / n - mean * mean
    zhat = (z - mean) * jax.lax.rsqrt(var + EPS)
    return jnp.maximum(zhat * g + be, 0.0)


def double_conv_ref(x_nchw, w1, b1, g1, be1, w2, b2, g2, be2, mimic_bf16=False):
    rd = ((lambda t: t.astype(jnp.bfloat16).astype(jnp.float32))
          if mimic_bf16 else (lambda t: t))
    x = jnp.transpose(x_nchw, (0, 2, 3, 1))
    y = _ref_stage(rd(x), rd(w1), b1, g1, be1)
    y = _ref_stage(rd(y), rd(w2), b2, g2, be2)
    return jnp.transpose(y, (0, 3, 1, 2))


# ---------------------------------- main --------------------------------------
if __name__ == "__main__":
    in_channels, out_channels = 4, 8
    N, H, W = 2, 16, 16          # W * out_channels = 128 -> lane-dense output

    key = jax.random.PRNGKey(0)
    ks = jax.random.split(key, 9)

    w1 = 0.2 * jax.random.normal(ks[0], (3, 3, in_channels, out_channels), jnp.float32)
    b1 = 0.1 * jax.random.normal(ks[1], (out_channels,), jnp.float32)
    g1 = 1.0 + 0.1 * jax.random.normal(ks[2], (out_channels,), jnp.float32)
    be1 = 0.1 * jax.random.normal(ks[3], (out_channels,), jnp.float32)

    w2 = 0.2 * jax.random.normal(ks[4], (3, 3, out_channels, out_channels), jnp.float32)
    b2 = 0.1 * jax.random.normal(ks[5], (out_channels,), jnp.float32)
    g2 = 1.0 + 0.1 * jax.random.normal(ks[6], (out_channels,), jnp.float32)
    be2 = 0.1 * jax.random.normal(ks[7], (out_channels,), jnp.float32)

    x = jax.random.normal(ks[8], (N, in_channels, H, W), jnp.float32)   # NCHW

    # Parameter prep hoisted out of the forward pass (once per parameter set).
    params = prepare_params(w1, b1, g1, be1, w2, b2, g2, be2, W)

    out = jax.block_until_ready(double_conv(x, params))
    assert out.shape == (N, out_channels, H, W), out.shape

    # Tight check vs. a reference that mimics the kernel's bf16-input / f32-acc
    # matmuls (isolates kernel plumbing from the deliberate precision choice).
    # Reference keeps the conv biases; the kernel drops them (exact cancellation
    # under training-mode BN).
    ref16 = double_conv_ref(x, w1, b1, g1, be1, w2, b2, g2, be2, mimic_bf16=True)
    assert jnp.allclose(out, ref16, atol=1e-2, rtol=1e-2), (
        float(jnp.max(jnp.abs(out - ref16))))

    # Looser check vs. the full-f32 reference (headroom for bf16 matmul inputs).
    ref32 = double_conv_ref(x, w1, b1, g1, be1, w2, b2, g2, be2)
    assert jnp.allclose(out, ref32, atol=5e-2, rtol=5e-2), (
        float(jnp.max(jnp.abs(out - ref32))))

    print("KERNEL_OK")
</pallas_src>

<mosaic_0001>
module attributes {stable_mosaic.version = 11 : i64} {
  func.func @_fused_double_conv_kernel(%arg0: i32, %arg1: memref<32x64xf32, #tpu.memory_space<vmem>>, %arg2: memref<192x128xbf16, #tpu.memory_space<vmem>>, %arg3: memref<384x128xbf16, #tpu.memory_space<vmem>>, %arg4: memref<1x128xf32, #tpu.memory_space<vmem>>, %arg5: memref<1x128xf32, #tpu.memory_space<vmem>>, %arg6: memref<1x128xf32, #tpu.memory_space<vmem>>, %arg7: memref<1x128xf32, #tpu.memory_space<vmem>>, %arg8: memref<128x128xf32, #tpu.memory_space<vmem>>, %arg9: memref<32x128xf32, #tpu.memory_space<vmem>>) attributes {dimension_semantics = [#tpu.dimension_semantics<arbitrary>], iteration_bounds = array<i64: 1>, scalar_prefetch = 0 : i64, scratch_operands = 0 : i64, tpu.core_type = #tpu.core_type<tc>, window_params = [{pipeline_mode = #tpu.pipeline_mode<synchronous>, transform_indices = @transform_0, window_bounds = array<i64: 32, 64>}, {pipeline_mode = #tpu.pipeline_mode<synchronous>, transform_indices = @transform_1, window_bounds = array<i64: 192, 128>}, {pipeline_mode = #tpu.pipeline_mode<synchronous>, transform_indices = @transform_2, window_bounds = array<i64: 384, 128>}, {pipeline_mode = #tpu.pipeline_mode<synchronous>, transform_indices = @transform_3, window_bounds = array<i64: 1, 128>}, {pipeline_mode = #tpu.pipeline_mode<synchronous>, transform_indices = @transform_4, window_bounds = array<i64: 1, 128>}, {pipeline_mode = #tpu.pipeline_mode<synchronous>, transform_indices = @transform_5, window_bounds = array<i64: 1, 128>}, {pipeline_mode = #tpu.pipeline_mode<synchronous>, transform_indices = @transform_6, window_bounds = array<i64: 1, 128>}, {pipeline_mode = #tpu.pipeline_mode<synchronous>, transform_indices = @transform_7, window_bounds = array<i64: 128, 128>}, {pipeline_mode = #tpu.pipeline_mode<synchronous>, transform_indices = @transform_8, window_bounds = array<i64: 32, 128>}]} {
    %0 = tpu.iota {dimensions = array<i32: 0>} : vector<32x1xi32>
    %c15_i32 = arith.constant 15 : i32
    %1 = vector.broadcast %c15_i32 : i32 to vector<32x1xi32>
    %2 = arith.andi %0, %1 : vector<32x1xi32>
    %c0_i32 = arith.constant 0 : i32
    %3 = vector.broadcast %c0_i32 : i32 to vector<32x1xi32>
    %4 = arith.cmpi ne, %2, %3 : vector<32x1xi32>
    %c15_i32_0 = arith.constant 15 : i32
    %5 = vector.broadcast %c15_i32_0 : i32 to vector<32x1xi32>
    %6 = arith.cmpi ne, %2, %5 : vector<32x1xi32>
    %c0 = arith.constant 0 : index
    %c0_1 = arith.constant 0 : index
    %7 = vector.load %arg1[%c0, %c0_1] : memref<32x64xf32, #tpu.memory_space<vmem>>, vector<32x64xf32>
    %c1_i32 = arith.constant 1 : i32
    %8 = tpu.dynamic_rotate %7 by %c1_i32 dim 0 : vector<32x64xf32>, i32 -> vector<32x64xf32>
    %cst = arith.constant 0.000000e+00 : f32
    %9 = vector.shape_cast %4 : vector<32x1xi1> to vector<32x1xi1>
    %10 = vector.broadcast %9 : vector<32x1xi1> to vector<32x64xi1>
    %11 = vector.broadcast %cst : f32 to vector<32x64xf32>
    %12 = arith.select %10, %8, %11 : vector<32x64xi1>, vector<32x64xf32>
    %c31_i32 = arith.constant 31 : i32
    %13 = tpu.dynamic_rotate %7 by %c31_i32 dim 0 : vector<32x64xf32>, i32 -> vector<32x64xf32>
    %cst_2 = arith.constant 0.000000e+00 : f32
    %14 = vector.shape_cast %6 : vector<32x1xi1> to vector<32x1xi1>
    %15 = vector.broadcast %14 : vector<32x1xi1> to vector<32x64xi1>
    %16 = vector.broadcast %cst_2 : f32 to vector<32x64xf32>
    %17 = arith.select %15, %13, %16 : vector<32x64xi1>, vector<32x64xf32>
    %18 = arith.truncf %12 : vector<32x64xf32> to vector<32x64xbf16>
    %c0_3 = arith.constant 0 : index
    %c0_4 = arith.constant 0 : index
    %19 = vector.load %arg2[%c0_3, %c0_4] : memref<192x128xbf16, #tpu.memory_space<vmem>>, vector<64x128xbf16>
    %cst_5 = arith.constant dense<0.000000e+00> : vector<32x128xf32>
    %20 = tpu.matmul %18, %19, %cst_5 {dimension_numbers = #tpu.dot_dimension_numbers<[1], [0], [0], [1], [0, 0, 1, 1], [], []>} : vector<32x64xbf16>, vector<64x128xbf16>, vector<32x128xf32> -> vector<32x128xf32>
    %21 = arith.truncf %7 : vector<32x64xf32> to vector<32x64xbf16>
    %c64 = arith.constant 64 : index
    %c0_6 = arith.constant 0 : index
    %22 = vector.load %arg2[%c64, %c0_6] : memref<192x128xbf16, #tpu.memory_space<vmem>>, vector<64x128xbf16>
    %cst_7 = arith.constant dense<0.000000e+00> : vector<32x128xf32>
    %23 = tpu.matmul %21, %22, %cst_7 {dimension_numbers = #tpu.dot_dimension_numbers<[1], [0], [0], [1], [0, 0, 1, 1], [], []>} : vector<32x64xbf16>, vector<64x128xbf16>, vector<32x128xf32> -> vector<32x128xf32>
    %24 = arith.addf %20, %23 : vector<32x128xf32>
    %25 = arith.truncf %17 : vector<32x64xf32> to vector<32x64xbf16>
    %c128 = arith.constant 128 : index
    %c0_8 = arith.constant 0 : index
    %26 = vector.load %arg2[%c128, %c0_8] : memref<192x128xbf16, #tpu.memory_space<vmem>>, vector<64x128xbf16>
    %cst_9 = arith.constant dense<0.000000e+00> : vector<32x128xf32>
    %27 = tpu.matmul %25, %26, %cst_9 {dimension_numbers = #tpu.dot_dimension_numbers<[1], [0], [0], [1], [0, 0, 1, 1], [], []>} : vector<32x64xbf16>, vector<64x128xbf16>, vector<32x128xf32> -> vector<32x128xf32>
    %28 = arith.addf %24, %27 : vector<32x128xf32>
    %c0_10 = arith.constant 0 : index
    %c0_11 = arith.constant 0 : index
    %29 = vector.load %arg4[%c0_10, %c0_11] : memref<1x128xf32, #tpu.memory_space<vmem>>, vector<1x128xf32>
    %c0_12 = arith.constant 0 : index
    %c0_13 = arith.constant 0 : index
    %30 = vector.load %arg5[%c0_12, %c0_13] : memref<1x128xf32, #tpu.memory_space<vmem>>, vector<1x128xf32>
    %cst_14 = arith.constant dense<0.000000e+00> : vector<128xf32>
    %31 = vector.multi_reduction <add>, %28, %cst_14 [0] : vector<32x128xf32> to vector<128xf32>
    %32 = vector.shape_cast %31 : vector<128xf32> to vector<1x128xf32>
    %33 = arith.mulf %28, %28 : vector<32x128xf32>
    %cst_15 = arith.constant dense<0.000000e+00> : vector<128xf32>
    %34 = vector.multi_reduction <add>, %33, %cst_15 [0] : vector<32x128xf32> to vector<128xf32>
    %35 = vector.shape_cast %34 : vector<128xf32> to vector<1x128xf32>
    %c0_16 = arith.constant 0 : index
    %c0_17 = arith.constant 0 : index
    %36 = vector.load %arg8[%c0_16, %c0_17] : memref<128x128xf32, #tpu.memory_space<vmem>>, vector<128x128xf32>
    %cst_18 = arith.constant dense<0.000000e+00> : vector<1x128xf32>
    %37 = tpu.matmul %32, %36, %cst_18 {dimension_numbers = #tpu.dot_dimension_numbers<[1], [0], [0], [1], [0, 0, 1, 1], [], []>} : vector<1x128xf32>, vector<128x128xf32>, vector<1x128xf32> -> vector<1x128xf32>
    %cst_19 = arith.constant 0.001953125 : f32
    %38 = vector.broadcast %cst_19 : f32 to vector<1x128xf32>
    %39 = arith.mulf %37, %38 : vector<1x128xf32>
    %c0_20 = arith.constant 0 : index
    %c0_21 = arith.constant 0 : index
    %40 = vector.load %arg8[%c0_20, %c0_21] : memref<128x128xf32, #tpu.memory_space<vmem>>, vector<128x128xf32>
    %cst_22 = arith.constant dense<0.000000e+00> : vector<1x128xf32>
    %41 = tpu.matmul %35, %40, %cst_22 {dimension_numbers = #tpu.dot_dimension_numbers<[1], [0], [0], [1], [0, 0, 1, 1], [], []>} : vector<1x128xf32>, vector<128x128xf32>, vector<1x128xf32> -> vector<1x128xf32>
    %cst_23 = arith.constant 0.001953125 : f32
    %42 = vector.broadcast %cst_23 : f32 to vector<1x128xf32>
    %43 = arith.mulf %41, %42 : vector<1x128xf32>
    %44 = arith.mulf %39, %39 : vector<1x128xf32>
    %45 = arith.subf %43, %44 : vector<1x128xf32>
    %cst_24 = arith.constant 9.99999974E-6 : f32
    %46 = vector.broadcast %cst_24 : f32 to vector<1x128xf32>
    %47 = arith.addf %45, %46 : vector<1x128xf32>
    %48 = math.rsqrt %47 : vector<1x128xf32>
    %49 = arith.mulf %29, %48 : vector<1x128xf32>
    %50 = arith.mulf %39, %49 : vector<1x128xf32>
    %51 = arith.subf %30, %50 : vector<1x128xf32>
    %52 = vector.broadcast %49 : vector<1x128xf32> to vector<32x128xf32>
    %53 = arith.mulf %28, %52 : vector<32x128xf32>
    %54 = vector.broadcast %51 : vector<1x128xf32> to vector<32x128xf32>
    %55 = arith.addf %53, %54 : vector<32x128xf32>
    %cst_25 = arith.constant 0.000000e+00 : f32
    %56 = vector.broadcast %cst_25 : f32 to vector<32x128xf32>
    %57 = arith.maximumf %55, %56 : vector<32x128xf32>
    %c1_i32_26 = arith.constant 1 : i32
    %58 = tpu.dynamic_rotate %57 by %c1_i32_26 dim 0 : vector<32x128xf32>, i32 -> vector<32x128xf32>
    %cst_27 = arith.constant 0.000000e+00 : f32
    %59 = vector.shape_cast %4 : vector<32x1xi1> to vector<32x1xi1>
    %60 = vector.broadcast %59 : vector<32x1xi1> to vector<32x128xi1>
    %61 = vector.broadcast %cst_27 : f32 to vector<32x128xf32>
    %62 = arith.select %60, %58, %61 : vector<32x128xi1>, vector<32x128xf32>
    %c31_i32_28 = arith.constant 31 : i32
    %63 = tpu.dynamic_rotate %57 by %c31_i32_28 dim 0 : vector<32x128xf32>, i32 -> vector<32x128xf32>
    %cst_29 = arith.constant 0.000000e+00 : f32
    %64 = vector.shape_cast %6 : vector<32x1xi1> to vector<32x1xi1>
    %65 = vector.broadcast %64 : vector<32x1xi1> to vector<32x128xi1>
    %66 = vector.broadcast %cst_29 : f32 to vector<32x128xf32>
    %67 = arith.select %65, %63, %66 : vector<32x128xi1>, vector<32x128xf32>
    %68 = arith.truncf %62 : vector<32x128xf32> to vector<32x128xbf16>
    %c0_30 = arith.constant 0 : index
    %c0_31 = arith.constant 0 : index
    %69 = vector.load %arg3[%c0_30, %c0_31] : memref<384x128xbf16, #tpu.memory_space<vmem>>, vector<128x128xbf16>
    %cst_32 = arith.constant dense<0.000000e+00> : vector<32x128xf32>
    %70 = tpu.matmul %68, %69, %cst_32 {dimension_numbers = #tpu.dot_dimension_numbers<[1], [0], [0], [1], [0, 0, 1, 1], [], []>} : vector<32x128xbf16>, vector<128x128xbf16>, vector<32x128xf32> -> vector<32x128xf32>
    %71 = arith.truncf %57 : vector<32x128xf32> to vector<32x128xbf16>
    %c128_33 = arith.constant 128 : index
    %c0_34 = arith.constant 0 : index
    %72 = vector.load %arg3[%c128_33, %c0_34] : memref<384x128xbf16, #tpu.memory_space<vmem>>, vector<128x128xbf16>
    %cst_35 = arith.constant dense<0.000000e+00> : vector<32x128xf32>
    %73 = tpu.matmul %71, %72, %cst_35 {dimension_numbers = #tpu.dot_dimension_numbers<[1], [0], [0], [1], [0, 0, 1, 1], [], []>} : vector<32x128xbf16>, vector<128x128xbf16>, vector<32x128xf32> -> vector<32x128xf32>
    %74 = arith.addf %70, %73 : vector<32x128xf32>
    %75 = arith.truncf %67 : vector<32x128xf32> to vector<32x128xbf16>
    %c256 = arith.constant 256 : index
    %c0_36 = arith.constant 0 : index
    %76 = vector.load %arg3[%c256, %c0_36] : memref<384x128xbf16, #tpu.memory_space<vmem>>, vector<128x128xbf16>
    %cst_37 = arith.constant dense<0.000000e+00> : vector<32x128xf32>
    %77 = tpu.matmul %75, %76, %cst_37 {dimension_numbers = #tpu.dot_dimension_numbers<[1], [0], [0], [1], [0, 0, 1, 1], [], []>} : vector<32x128xbf16>, vector<128x128xbf16>, vector<32x128xf32> -> vector<32x128xf32>
    %78 = arith.addf %74, %77 : vector<32x128xf32>
    %c0_38 = arith.constant 0 : index
    %c0_39 = arith.constant 0 : index
    %79 = vector.load %arg6[%c0_38, %c0_39] : memref<1x128xf32, #tpu.memory_space<vmem>>, vector<1x128xf32>
    %c0_40 = arith.constant 0 : index
    %c0_41 = arith.constant 0 : index
    %80 = vector.load %arg7[%c0_40, %c0_41] : memref<1x128xf32, #tpu.memory_space<vmem>>, vector<1x128xf32>
    %cst_42 = arith.constant dense<0.000000e+00> : vector<128xf32>
    %81 = vector.multi_reduction <add>, %78, %cst_42 [0] : vector<32x128xf32> to vector<128xf32>
    %82 = vector.shape_cast %81 : vector<128xf32> to vector<1x128xf32>
    %83 = arith.mulf %78, %78 : vector<32x128xf32>
    %cst_43 = arith.constant dense<0.000000e+00> : vector<128xf32>
    %84 = vector.multi_reduction <add>, %83, %cst_43 [0] : vector<32x128xf32> to vector<128xf32>
    %85 = vector.shape_cast %84 : vector<128xf32> to vector<1x128xf32>
    %c0_44 = arith.constant 0 : index
    %c0_45 = arith.constant 0 : index
    %86 = vector.load %arg8[%c0_44, %c0_45] : memref<128x128xf32, #tpu.memory_space<vmem>>, vector<128x128xf32>
    %cst_46 = arith.constant dense<0.000000e+00> : vector<1x128xf32>
    %87 = tpu.matmul %82, %86, %cst_46 {dimension_numbers = #tpu.dot_dimension_numbers<[1], [0], [0], [1], [0, 0, 1, 1], [], []>} : vector<1x128xf32>, vector<128x128xf32>, vector<1x128xf32> -> vector<1x128xf32>
    %cst_47 = arith.constant 0.001953125 : f32
    %88 = vector.broadcast %cst_47 : f32 to vector<1x128xf32>
    %89 = arith.mulf %87, %88 : vector<1x128xf32>
    %c0_48 = arith.constant 0 : index
    %c0_49 = arith.constant 0 : index
    %90 = vector.load %arg8[%c0_48, %c0_49] : memref<128x128xf32, #tpu.memory_space<vmem>>, vector<128x128xf32>
    %cst_50 = arith.constant dense<0.000000e+00> : vector<1x128xf32>
    %91 = tpu.matmul %85, %90, %cst_50 {dimension_numbers = #tpu.dot_dimension_numbers<[1], [0], [0], [1], [0, 0, 1, 1], [], []>} : vector<1x128xf32>, vector<128x128xf32>, vector<1x128xf32> -> vector<1x128xf32>
    %cst_51 = arith.constant 0.001953125 : f32
    %92 = vector.broadcast %cst_51 : f32 to vector<1x128xf32>
    %93 = arith.mulf %91, %92 : vector<1x128xf32>
    %94 = arith.mulf %89, %89 : vector<1x128xf32>
    %95 = arith.subf %93, %94 : vector<1x128xf32>
    %cst_52 = arith.constant 9.99999974E-6 : f32
    %96 = vector.broadcast %cst_52 : f32 to vector<1x128xf32>
    %97 = arith.addf %95, %96 : vector<1x128xf32>
    %98 = math.rsqrt %97 : vector<1x128xf32>
    %99 = arith.mulf %79, %98 : vector<1x128xf32>
    %100 = arith.mulf %89, %99 : vector<1x128xf32>
    %101 = arith.subf %80, %100 : vector<1x128xf32>
    %102 = vector.broadcast %99 : vector<1x128xf32> to vector<32x128xf32>
    %103 = arith.mulf %78, %102 : vector<32x128xf32>
    %104 = vector.broadcast %101 : vector<1x128xf32> to vector<32x128xf32>
    %105 = arith.addf %103, %104 : vector<32x128xf32>
    %cst_53 = arith.constant 0.000000e+00 : f32
    %106 = vector.broadcast %cst_53 : f32 to vector<32x128xf32>
    %107 = arith.maximumf %105, %106 : vector<32x128xf32>
    %c0_54 = arith.constant 0 : index
    %c0_55 = arith.constant 0 : index
    %108 = vector.load %arg9[%c0_54, %c0_55] : memref<32x128xf32, #tpu.memory_space<vmem>>, vector<32x128xf32>
    tpu.vector_store %arg9[%c0_54, %c0_55], %107 {strides = array<i32>} : memref<32x128xf32, #tpu.memory_space<vmem>>, vector<32x128xf32>,
    return
  }
  func.func @transform_0(%arg0: i32) -> (i32, i32) {
    %c0_i32 = arith.constant 0 : i32
    %c0_i32_0 = arith.constant 0 : i32
    %c0_i32_1 = arith.constant 0 : i32
    return %c0_i32, %c0_i32_0 : i32, i32
  }
  func.func @transform_1(%arg0: i32) -> (i32, i32) {
    %c0_i32 = arith.constant 0 : i32
    %c0_i32_0 = arith.constant 0 : i32
    %c0_i32_1 = arith.constant 0 : i32
    return %c0_i32, %c0_i32_0 : i32, i32
  }
  func.func @transform_2(%arg0: i32) -> (i32, i32) {
    %c0_i32 = arith.constant 0 : i32
    %c0_i32_0 = arith.constant 0 : i32
    %c0_i32_1 = arith.constant 0 : i32
    return %c0_i32, %c0_i32_0 : i32, i32
  }
  func.func @transform_3(%arg0: i32) -> (i32, i32) {
    %c0_i32 = arith.constant 0 : i32
    %c0_i32_0 = arith.constant 0 : i32
    %c0_i32_1 = arith.constant 0 : i32
    return %c0_i32, %c0_i32_0 : i32, i32
  }
  func.func @transform_4(%arg0: i32) -> (i32, i32) {
    %c0_i32 = arith.constant 0 : i32
    %c0_i32_0 = arith.constant 0 : i32
    %c0_i32_1 = arith.constant 0 : i32
    return %c0_i32, %c0_i32_0 : i32, i32
  }
  func.func @transform_5(%arg0: i32) -> (i32, i32) {
    %c0_i32 = arith.constant 0 : i32
    %c0_i32_0 = arith.constant 0 : i32
    %c0_i32_1 = arith.constant 0 : i32
    return %c0_i32, %c0_i32_0 : i32, i32
  }
  func.func @transform_6(%arg0: i32) -> (i32, i32) {
    %c0_i32 = arith.constant 0 : i32
    %c0_i32_0 = arith.constant 0 : i32
    %c0_i32_1 = arith.constant 0 : i32
    return %c0_i32, %c0_i32_0 : i32, i32
  }
  func.func @transform_7(%arg0: i32) -> (i32, i32) {
    %c0_i32 = arith.constant 0 : i32
    %c0_i32_0 = arith.constant 0 : i32
    %c0_i32_1 = arith.constant 0 : i32
    return %c0_i32, %c0_i32_0 : i32, i32
  }
  func.func @transform_8(%arg0: i32) -> (i32, i32) {
    %c0_i32 = arith.constant 0 : i32
    %c0_i32_0 = arith.constant 0 : i32
    %c0_i32_1 = arith.constant 0 : i32
    return %c0_i32, %c0_i32_0 : i32, i32
  }
}

</mosaic_0001>

<llo_original>
// kernel: double_conv.1
$region0: #{double_conv.1}
  #allocation0 [shape = 'u32[]', space=smem, size = 0x4, offset = 0x4, fixed_abs, tag = 'smem constant byte address 0x4 - core index']
  #allocation1 [shape = 'u32[72,128]{1,0:T(1,128)}', space=vmem, size = 0x9000, scoped, tag = 'internal scratch']
  %s0 = inlined_call_operand.vmem [shape: f32[32,64], index: 0, kind: input, shape index: {}]
  %s1 = inlined_call_operand.vmem [shape: bf16[192,128], index: 1, kind: input, shape index: {}]
  %s2 = inlined_call_operand.vmem [shape: bf16[384,128], index: 2, kind: input, shape index: {}]
  %s3 = inlined_call_operand.vmem [shape: f32[1,128], index: 3, kind: input, shape index: {}]
  %s4 = inlined_call_operand.vmem [shape: f32[1,128], index: 4, kind: input, shape index: {}]
  %s5 = inlined_call_operand.vmem [shape: f32[1,128], index: 5, kind: input, shape index: {}]
  %s6 = inlined_call_operand.vmem [shape: f32[1,128], index: 6, kind: input, shape index: {}]
  %s7 = inlined_call_operand.vmem [shape: f32[128,128], index: 7, kind: input, shape index: {}]
  %s8 = inlined_call_operand.vmem [shape: f32[32,128], index: 8, kind: output, shape index: {}]
  %s9 = sld [smem:[#allocation0]]
  $region42: #{double_conv.1} parent=0
    _
  %s11 = ssub.s32 1, %s9
  %s12 = scalar_select 0, %s11, %s9
  // Predicated region
  $region2: #{double_conv.1} parent=0 // pred_check
    _
  $region3: #{double_conv.1} parent=0 // pred_check_branch
    %14 = sbr.rel (0) target = $region5
  $region4: #{double_conv.1} parent=0 // pred_region
    _
  $region5: #{double_conv.1} parent=0 // pred_fallthru
    _
  // Predicated region
  $region6: #{double_conv.1} parent=0 // pred_check
    _
  $region7: #{double_conv.1} parent=0 // pred_check_branch
    %16 = sbr.rel (0) target = $region9
  $region8: #{double_conv.1} parent=0 // pred_region
    _
  $region9: #{double_conv.1} parent=0 // pred_fallthru
    _
  // Predicated region
  $region10: #{double_conv.1} parent=0 // pred_check
    _
  $region11: #{double_conv.1} parent=0 // pred_check_branch
    %18 = sbr.rel (0) target = $region13
  $region12: #{double_conv.1} parent=0 // pred_region
    _
  $region13: #{double_conv.1} parent=0 // pred_fallthru
    _
  // Predicated region
  $region14: #{double_conv.1} parent=0 // pred_check
    _
  $region15: #{double_conv.1} parent=0 // pred_check_branch
    %20 = sbr.rel (0) target = $region17
  $region16: #{double_conv.1} parent=0 // pred_region
    _
  $region17: #{double_conv.1} parent=0 // pred_fallthru
    _
  // Predicated region
  $region18: #{double_conv.1} parent=0 // pred_check
    _
  $region19: #{double_conv.1} parent=0 // pred_check_branch
    %22 = sbr.rel (0) target = $region21
  $region20: #{double_conv.1} parent=0 // pred_region
    _
  $region21: #{double_conv.1} parent=0 // pred_fallthru
    _
  // Predicated region
  $region22: #{double_conv.1} parent=0 // pred_check
    _
  $region23: #{double_conv.1} parent=0 // pred_check_branch
    %24 = sbr.rel (0) target = $region25
  $region24: #{double_conv.1} parent=0 // pred_region
    _
  $region25: #{double_conv.1} parent=0 // pred_fallthru
    _
  // Predicated region
  $region26: #{double_conv.1} parent=0 // pred_check
    _
  $region27: #{double_conv.1} parent=0 // pred_check_branch
    %26 = sbr.rel (0) target = $region29
  $region28: #{double_conv.1} parent=0 // pred_region
    _
  $region29: #{double_conv.1} parent=0 // pred_fallthru
    _
  // Predicated region
  $region30: #{double_conv.1} parent=0 // pred_check
    _
  $region31: #{double_conv.1} parent=0 // pred_check_branch
    %28 = sbr.rel (0) target = $region33
  $region32: #{double_conv.1} parent=0 // pred_region
    _
  $region33: #{double_conv.1} parent=0 // pred_fallthru
    _
  %v30 = vlaneseq
  %v31 = vshrl.u32 %v30, 7
  %v32 = vadd.s32 %v31, 8
  %v33 = vadd.s32 %v31, 16
  %v34 = vadd.s32 %v31, 24
  %v35 = vand.u32 %v31, 15
  %v36 = vand.u32 %v32, 15
  %v37 = vand.u32 %v33, 15
  %v38 = vand.u32 %v34, 15
  %vm39 = vcmp.ne.s32.totalorder %v35, 0
  %vm40 = vcmp.ne.s32.totalorder %v36, 0
  %vm41 = vcmp.ne.s32.totalorder %v37, 0
  %vm42 = vcmp.ne.s32.totalorder %v38, 0
  %vm43 = vcmp.ne.s32.totalorder %v35, 15
  %vm44 = vcmp.ne.s32.totalorder %v36, 15
  %vm45 = vcmp.ne.s32.totalorder %v37, 15
  %vm46 = vcmp.ne.s32.totalorder %v38, 15
  %v47 = vld [vmem:[%s0] sm:$0xff]
  %v48 = vld [vmem:[%s0 + $0x8] sm:$0xff]
  %v49 = vld [vmem:[%s0 + $0x10] sm:$0xff]
  %v50 = vld [vmem:[%s0 + $0x18] sm:$0xff]
  %v51 = vrot.slane %v47, 7
  %v52 = vrot.slane %v48, 7
  %v53 = vrot.slane %v49, 7
  %v54 = vrot.slane %v50, 7
  %vm55 = vcmp.lt.s32.totalorder %v31, 1
  %v56 = vsel %vm55, %v53, %v54
  %v57 = vsel %vm55, %v52, %v53
  %v58 = vsel %vm55, %v51, %v52
  %v59 = vsel %vm55, %v54, %v51
  %v60 = vsel %vm39, 1, 0
  %v61 = vsel %vm40, 1, 0
  %v62 = vsel %vm41, 1, 0
  %v63 = vsel %vm42, 1, 0
  %vm64 = vcmp.eq.s32.totalorder %v60, 1
  %vm65 = vcmp.eq.s32.totalorder %v61, 1
  %vm66 = vcmp.eq.s32.totalorder %v62, 1
  %vm67 = vcmp.eq.s32.totalorder %v63, 1
  %v68 = vsel %vm64, %v59, 0.0
  %v69 = vsel %vm65, %v58, 0.0
  %v70 = vsel %vm66, %v57, 0.0
  %v71 = vsel %vm67, %v56, 0.0
  %v72 = vrot.slane %v47, 1
  %v73 = vrot.slane %v48, 1
  %v74 = vrot.slane %v49, 1
  %v75 = vrot.slane %v50, 1
  %vm76 = vcmp.lt.s32.totalorder %v31, 7
  %v77 = vsel %vm76, %v74, %v75
  %v78 = vsel %vm76, %v73, %v74
  %v79 = vsel %vm76, %v72, %v73
  %v80 = vsel %vm76, %v75, %v72
  %v81 = vsel %vm43, 1, 0
  %v82 = vsel %vm44, 1, 0
  %v83 = vsel %vm45, 1, 0
  %v84 = vsel %vm46, 1, 0
  %vm85 = vcmp.eq.s32.totalorder %v81, 1
  %vm86 = vcmp.eq.s32.totalorder %v82, 1
  %vm87 = vcmp.eq.s32.totalorder %v83, 1
  %vm88 = vcmp.eq.s32.totalorder %v84, 1
  %v89 = vsel %vm85, %v79, 0.0
  %v90 = vsel %vm86, %v78, 0.0
  %v91 = vsel %vm87, %v77, 0.0
  %v92 = vsel %vm88, %v80, 0.0
  %v93 = vpack.c.bf16 %v69, %v68
  %v94 = vpack.c.bf16 %v71, %v70
  %v95 = vld [vmem:[%s1] sm:$0xf]
  %v96 = vld [vmem:[%s1 + $0x4] sm:$0xf]
  %v97 = vld [vmem:[%s1 + $0x8] sm:$0xf]
  %v98 = vld [vmem:[%s1 + $0xc] sm:$0xf]
  %v99 = vld [vmem:[%s1 + $0x10] sm:$0xf]
  %v100 = vld [vmem:[%s1 + $0x14] sm:$0xf]
  %v101 = vld [vmem:[%s1 + $0x18] sm:$0xf]
  %v102 = vld [vmem:[%s1 + $0x1c] sm:$0xf]
  %v103 = vpack.c.bf16 %v48, %v47
  %v104 = vpack.c.bf16 %v50, %v49
  %v105 = vld [vmem:[%s1 + $0x20] sm:$0xf]
  %v106 = vld [vmem:[%s1 + $0x24] sm:$0xf]
  %v107 = vld [vmem:[%s1 + $0x28] sm:$0xf]
  %v108 = vld [vmem:[%s1 + $0x2c] sm:$0xf]
  %v109 = vld [vmem:[%s1 + $0x30] sm:$0xf]
  %v110 = vld [vmem:[%s1 + $0x34] sm:$0xf]
  %v111 = vld [vmem:[%s1 + $0x38] sm:$0xf]
  %v112 = vld [vmem:[%s1 + $0x3c] sm:$0xf]
  %v121 = vunpack.c.l.b16 %v105
  %v122 = vunpack.c.l.b16 %v106
  %v123 = vunpack.c.l.b16 %v107
  %v124 = vunpack.c.l.b16 %v108
  %v125 = vunpack.c.l.b16 %v109
  %v126 = vunpack.c.l.b16 %v110
  %v127 = vunpack.c.l.b16 %v111
  %v128 = vunpack.c.l.b16 %v112
  %v129 = vpack.c.b16 %v122, %v121
  %v130 = vpack.c.b16 %v124, %v123
  %v131 = vpack.c.b16 %v126, %v125
  %v132 = vpack.c.b16 %v128, %v127
  %vm137 = vcmask 523264
  %v139 = vsel %vm137, %v103, 0
  %v142 = vsel %vm137, %v104, 0
  %144 = vmatpush.bf16.msra.mxu0 0
  %145 = vmatpush.bf16.msra.mxu0 0
  %146 = vmatpush.bf16.msra.mxu0 0
  %147 = vmatpush.bf16.msra.mxu0 0
  %148 = vmatpush.bf16.msra.mxu0 %v132
  %149 = vmatpush.bf16.msra.mxu0 %v131
  %150 = vmatpush.bf16.msra.mxu0 %v130
  %151 = vmatpush.bf16.msra.mxu0 %v129
  %152 = vmatmul.bf16.gmra.mxu0 %v139
  %v153 = vpop.f32.mrf.mxu0
  %v154 = vadd.f32 0.0, %v153
  %v155 = vpop.f32.mrf.mxu0
  %v156 = vadd.f32 0.0, %v155
  %157 = vmatmul.bf16.gmra.mxu0 %v142
  %v158 = vpop.f32.mrf.mxu0
  %v159 = vadd.f32 0.0, %v158
  %v160 = vpop.f32.mrf.mxu0
  %v161 = vadd.f32 0.0, %v160
  %162 = vdwg.mxu0
  %v171 = vunpack.c.l.b16 %v95
  %v172 = vunpack.c.l.b16 %v96
  %v173 = vunpack.c.l.b16 %v97
  %v174 = vunpack.c.l.b16 %v98
  %v175 = vunpack.c.l.b16 %v99
  %v176 = vunpack.c.l.b16 %v100
  %v177 = vunpack.c.l.b16 %v101
  %v178 = vunpack.c.l.b16 %v102
  %v179 = vpack.c.b16 %v172, %v171
  %v180 = vpack.c.b16 %v174, %v173
  %v181 = vpack.c.b16 %v176, %v175
  %v182 = vpack.c.b16 %v178, %v177
  %v188 = vsel %vm137, %v93, 0
  %v191 = vsel %vm137, %v94, 0
  %193 = vmatpush.bf16.msra.mxu0 0
  %194 = vmatpush.bf16.msra.mxu0 0
  %195 = vmatpush.bf16.msra.mxu0 0
  %196 = vmatpush.bf16.msra.mxu0 0
  %197 = vmatpush.bf16.msra.mxu0 %v182
  %198 = vmatpush.bf16.msra.mxu0 %v181
  %199 = vmatpush.bf16.msra.mxu0 %v180
  %200 = vmatpush.bf16.msra.mxu0 %v179
  %201 = vmatmul.bf16.gmra.mxu0 %v188
  %v202 = vpop.f32.mrf.mxu0
  %v203 = vadd.f32 %v154, %v202
  %v204 = vpop.f32.mrf.mxu0
  %v205 = vadd.f32 %v156, %v204
  %206 = vmatmul.bf16.gmra.mxu0 %v191
  %v207 = vpop.f32.mrf.mxu0
  %v208 = vadd.f32 %v159, %v207
  %v209 = vpop.f32.mrf.mxu0
  %v210 = vadd.f32 %v161, %v209
  %211 = vdwg.mxu0
  %v212 = vpack.c.bf16 %v90, %v89
  %v213 = vpack.c.bf16 %v92, %v91
  %v214 = vld [vmem:[%s1 + $0x40] sm:$0xf]
  %v215 = vld [vmem:[%s1 + $0x44] sm:$0xf]
  %v216 = vld [vmem:[%s1 + $0x48] sm:$0xf]
  %v217 = vld [vmem:[%s1 + $0x4c] sm:$0xf]
  %v218 = vld [vmem:[%s1 + $0x50] sm:$0xf]
  %v219 = vld [vmem:[%s1 + $0x54] sm:$0xf]
  %v220 = vld [vmem:[%s1 + $0x58] sm:$0xf]
  %v221 = vld [vmem:[%s1 + $0x5c] sm:$0xf]
  %v230 = vunpack.c.l.b16 %v214
  %v231 = vunpack.c.l.b16 %v215
  %v232 = vunpack.c.l.b16 %v216
  %v233 = vunpack.c.l.b16 %v217
  %v234 = vunpack.c.l.b16 %v218
  %v235 = vunpack.c.l.b16 %v219
  %v236 = vunpack.c.l.b16 %v220
  %v237 = vunpack.c.l.b16 %v221
  %v238 = vpack.c.b16 %v231, %v230
  %v239 = vpack.c.b16 %v233, %v232
  %v240 = vpack.c.b16 %v235, %v234
  %v241 = vpack.c.b16 %v237, %v236
  %v247 = vsel %vm137, %v212, 0
  %v250 = vsel %vm137, %v213, 0
  %252 = vmatpush.bf16.msra.mxu0 0
  %253 = vmatpush.bf16.msra.mxu0 0
  %254 = vmatpush.bf16.msra.mxu0 0
  %255 = vmatpush.bf16.msra.mxu0 0
  %256 = vmatpush.bf16.msra.mxu0 %v241
  %257 = vmatpush.bf16.msra.mxu0 %v240
  %258 = vmatpush.bf16.msra.mxu0 %v239
  %259 = vmatpush.bf16.msra.mxu0 %v238
  %260 = vmatmul.bf16.gmra.mxu0 %v247
  %v261 = vpop.f32.mrf.mxu0
  %v262 = vadd.f32 0.0, %v261
  %v263 = vpop.f32.mrf.mxu0
  %v264 = vadd.f32 0.0, %v263
  %265 = vmatmul.bf16.gmra.mxu0 %v250
  %v266 = vpop.f32.mrf.mxu0
  %v267 = vadd.f32 0.0, %v266
  %v268 = vpop.f32.mrf.mxu0
  %v269 = vadd.f32 0.0, %v268
  %270 = vdwg.mxu0
  %v271 = vadd.f32 %v203, %v262
  %v272 = vadd.f32 %v205, %v264
  %v273 = vadd.f32 %v208, %v267
  %v274 = vadd.f32 %v210, %v269
  %v275 = vld [vmem:[%s3] sm:$0x1]
  %v276 = vld [vmem:[%s4] sm:$0x1]
  %v277 = vadd.f32 %v271, %v272
  %v278 = vadd.f32 %v277, %v273
  %v279 = vadd.f32 %v278, %v274
  %v280 = vrot.slane %v279, 4
  %v281 = vadd.f32 %v279, %v280
  %v282 = vrot.slane %v281, 2
  %v283 = vadd.f32 %v281, %v282
  %v284 = vrot.slane %v283, 1
  %v285 = vadd.f32 %v283, %v284
  %v286 = vmul.f32 %v271, %v271
  %v287 = vmul.f32 %v272, %v272
  %v288 = vmul.f32 %v273, %v273
  %v289 = vmul.f32 %v274, %v274
  %v290 = vadd.f32 %v286, %v287
  %v291 = vadd.f32 %v290, %v288
  %v292 = vadd.f32 %v291, %v289
  %v293 = vrot.slane %v292, 4
  %v294 = vadd.f32 %v292, %v293
  %v295 = vrot.slane %v294, 2
  %v296 = vadd.f32 %v294, %v295
  %v297 = vrot.slane %v296, 1
  %v298 = vadd.f32 %v296, %v297
  %v299 = vld [vmem:[%s7] sm:$0xff]
  %v300 = vld [vmem:[%s7 + $0x8] sm:$0xff]
  %v301 = vld [vmem:[%s7 + $0x10] sm:$0xff]
  %v302 = vld [vmem:[%s7 + $0x18] sm:$0xff]
  %v303 = vld [vmem:[%s7 + $0x20] sm:$0xff]
  %v304 = vld [vmem:[%s7 + $0x28] sm:$0xff]
  %v305 = vld [vmem:[%s7 + $0x30] sm:$0xff]
  %v306 = vld [vmem:[%s7 + $0x38] sm:$0xff]
  %v307 = vld [vmem:[%s7 + $0x40] sm:$0xff]
  %v308 = vld [vmem:[%s7 + $0x48] sm:$0xff]
  %v309 = vld [vmem:[%s7 + $0x50] sm:$0xff]
  %v310 = vld [vmem:[%s7 + $0x58] sm:$0xff]
  %v311 = vld [vmem:[%s7 + $0x60] sm:$0xff]
  %v312 = vld [vmem:[%s7 + $0x68] sm:$0xff]
  %v313 = vld [vmem:[%s7 + $0x70] sm:$0xff]
  %v314 = vld [vmem:[%s7 + $0x78] sm:$0xff]
  %315 = vmatpush.msra.mxu0 %v314
  %316 = vmatpush.msra.mxu0 %v313
  %317 = vmatpush.msra.mxu0 %v312
  %318 = vmatpush.msra.mxu0 %v311
  %319 = vmatpush.msra.mxu0 %v310
  %320 = vmatpush.msra.mxu0 %v309
  %321 = vmatpush.msra.mxu0 %v308
  %322 = vmatpush.msra.mxu0 %v307
  %323 = vmatpush.msra.mxu0 %v306
  %324 = vmatpush.msra.mxu0 %v305
  %325 = vmatpush.msra.mxu0 %v304
  %326 = vmatpush.msra.mxu0 %v303
  %327 = vmatpush.msra.mxu0 %v302
  %328 = vmatpush.msra.mxu0 %v301
  %329 = vmatpush.msra.mxu0 %v300
  %330 = vmatpush.msra.mxu0 %v299
  %331 = vmatmul.f32.gmra.mxu0 %v285
  %v332 = vpop.f32.mrf.mxu0
  %v333 = vadd.f32 0.0, %v332
  %334 = vdwg.mxu0
  %v335 = vmul.f32 %v333, 0.001953125
  %336 = vmatpush.msra.mxu0 %v314
  %337 = vmatpush.msra.mxu0 %v313
  %338 = vmatpush.msra.mxu0 %v312
  %339 = vmatpush.msra.mxu0 %v311
  %340 = vmatpush.msra.mxu0 %v310
  %341 = vmatpush.msra.mxu0 %v309
  %342 = vmatpush.msra.mxu0 %v308
  %343 = vmatpush.msra.mxu0 %v307
  %344 = vmatpush.msra.mxu0 %v306
  %345 = vmatpush.msra.mxu0 %v305
  %346 = vmatpush.msra.mxu0 %v304
  %347 = vmatpush.msra.mxu0 %v303
  %348 = vmatpush.msra.mxu0 %v302
  %349 = vmatpush.msra.mxu0 %v301
  %350 = vmatpush.msra.mxu0 %v300
  %351 = vmatpush.msra.mxu0 %v299
  %352 = vmatmul.f32.gmra.mxu0 %v298
  %v353 = vpop.f32.mrf.mxu0
  %v354 = vadd.f32 0.0, %v353
  %355 = vdwg.mxu0
  %v356 = vmul.f32 %v354, 0.001953125
  %v357 = vmul.f32 %v335, %v335
  %v358 = vsub.f32 %v356, %v357
  %v359 = vadd.f32 %v358, 1e-05
  %v360 = vrsqrt.pop %v359
  %v361 = vmul.f32 %v360, %v359
  %v362 = vmul.f32 %v361, %v360
  %v363 = vmul.f32 0.5, %v362
  %v364 = vsub.f32 1.5, %v363
  %v365 = vmul.f32 %v360, %v364
  %vm366 = vweird.f32 %v359
  %vm367 = vweird.f32 %v360
  %vm368 = vmor %vm366, %vm367
  %v369 = vsel %vm368, %v360, %v365
  %v370 = vmul.f32 %v275, %v369
  %v371 = vmul.f32 %v335, %v370
  %v372 = vsub.f32 %v276, %v371
  %v374 = vperm.slane %v370, 0
  %v376 = vmul.f32 %v271, %v374
  %v377 = vmul.f32 %v272, %v374
  %v378 = vmul.f32 %v273, %v374
  %v379 = vmul.f32 %v274, %v374
  %v381 = vperm.slane %v372, 0
  %v383 = vadd.f32 %v376, %v381
  %v384 = vadd.f32 %v377, %v381
  %v385 = vadd.f32 %v378, %v381
  %v386 = vadd.f32 %v379, %v381
  %v387 = vmax.f32 %v383, 0.0
  %v388 = vmax.f32 %v384, 0.0
  %v389 = vmax.f32 %v385, 0.0
  %v390 = vmax.f32 %v386, 0.0
  %v391 = vrot.slane %v387, 7
  %v392 = vrot.slane %v388, 7
  %v393 = vrot.slane %v389, 7
  %v394 = vrot.slane %v390, 7
  %v395 = vsel %vm55, %v393, %v394
  %v396 = vsel %vm55, %v392, %v393
  %v397 = vsel %vm55, %v391, %v392
  %v398 = vsel %vm55, %v394, %v391
  %v399 = vsel %vm64, %v398, 0.0
  %v400 = vsel %vm65, %v397, 0.0
  %v401 = vsel %vm66, %v396, 0.0
  %v402 = vsel %vm67, %v395, 0.0
  %v403 = vrot.slane %v387, 1
  %v404 = vrot.slane %v388, 1
  %v405 = vrot.slane %v389, 1
  %v406 = vrot.slane %v390, 1
  %v407 = vsel %vm76, %v405, %v406
  %v408 = vsel %vm76, %v404, %v405
  %v409 = vsel %vm76, %v403, %v404
  %v410 = vsel %vm76, %v406, %v403
  %v411 = vsel %vm85, %v409, 0.0
  %v412 = vsel %vm86, %v408, 0.0
  %v413 = vsel %vm87, %v407, 0.0
  %v414 = vsel %vm88, %v410, 0.0
  %v415 = vpack.c.bf16 %v400, %v399
  %v416 = vpack.c.bf16 %v402, %v401
  %v417 = vld [vmem:[%s2] sm:$0xf]
  %v418 = vld [vmem:[%s2 + $0x4] sm:$0xf]
  %v419 = vld [vmem:[%s2 + $0x8] sm:$0xf]
  %v420 = vld [vmem:[%s2 + $0xc] sm:$0xf]
  %v421 = vld [vmem:[%s2 + $0x10] sm:$0xf]
  %v422 = vld [vmem:[%s2 + $0x14] sm:$0xf]
  %v423 = vld [vmem:[%s2 + $0x18] sm:$0xf]
  %v424 = vld [vmem:[%s2 + $0x1c] sm:$0xf]
  %v425 = vld [vmem:[%s2 + $0x20] sm:$0xf]
  %v426 = vld [vmem:[%s2 + $0x24] sm:$0xf]
  %v427 = vld [vmem:[%s2 + $0x28] sm:$0xf]
  %v428 = vld [vmem:[%s2 + $0x2c] sm:$0xf]
  %v429 = vld [vmem:[%s2 + $0x30] sm:$0xf]
  %v430 = vld [vmem:[%s2 + $0x34] sm:$0xf]
  %v431 = vld [vmem:[%s2 + $0x38] sm:$0xf]
  %v432 = vld [vmem:[%s2 + $0x3c] sm:$0xf]
  %v433 = vpack.c.bf16 %v388, %v387
  %v434 = vpack.c.bf16 %v390, %v389
  %v435 = vld [vmem:[%s2 + $0x40] sm:$0xf]
  %v436 = vld [vmem:[%s2 + $0x44] sm:$0xf]
  %v437 = vld [vmem:[%s2 + $0x48] sm:$0xf]
  %v438 = vld [vmem:[%s2 + $0x4c] sm:$0xf]
  %v439 = vld [vmem:[%s2 + $0x50] sm:$0xf]
  %v440 = vld [vmem:[%s2 + $0x54] sm:$0xf]
  %v441 = vld [vmem:[%s2 + $0x58] sm:$0xf]
  %v442 = vld [vmem:[%s2 + $0x5c] sm:$0xf]
  %v443 = vld [vmem:[%s2 + $0x60] sm:$0xf]
  %v444 = vld [vmem:[%s2 + $0x64] sm:$0xf]
  %v445 = vld [vmem:[%s2 + $0x68] sm:$0xf]
  %v446 = vld [vmem:[%s2 + $0x6c] sm:$0xf]
  %v447 = vld [vmem:[%s2 + $0x70] sm:$0xf]
  %v448 = vld [vmem:[%s2 + $0x74] sm:$0xf]
  %v449 = vld [vmem:[%s2 + $0x78] sm:$0xf]
  %v450 = vld [vmem:[%s2 + $0x7c] sm:$0xf]
  %v467 = vunpack.c.l.b16 %v435
  %v468 = vunpack.c.l.b16 %v436
  %v469 = vunpack.c.l.b16 %v437
  %v470 = vunpack.c.l.b16 %v438
  %v471 = vunpack.c.l.b16 %v439
  %v472 = vunpack.c.l.b16 %v440
  %v473 = vunpack.c.l.b16 %v441
  %v474 = vunpack.c.l.b16 %v442
  %v475 = vunpack.c.l.b16 %v443
  %v476 = vunpack.c.l.b16 %v444
  %v477 = vunpack.c.l.b16 %v445
  %v478 = vunpack.c.l.b16 %v446
  %v479 = vunpack.c.l.b16 %v447
  %v480 = vunpack.c.l.b16 %v448
  %v481 = vunpack.c.l.b16 %v449
  %v482 = vunpack.c.l.b16 %v450
  %v483 = vpack.c.b16 %v468, %v467
  %v484 = vpack.c.b16 %v470, %v469
  %v485 = vpack.c.b16 %v472, %v471
  %v486 = vpack.c.b16 %v474, %v473
  %v487 = vpack.c.b16 %v476, %v475
  %v488 = vpack.c.b16 %v478, %v477
  %v489 = vpack.c.b16 %v480, %v479
  %v490 = vpack.c.b16 %v482, %v481
  %499 = vmatpush.bf16.msra.mxu0 %v490
  %500 = vmatpush.bf16.msra.mxu0 %v489
  %501 = vmatpush.bf16.msra.mxu0 %v488
  %502 = vmatpush.bf16.msra.mxu0 %v487
  %503 = vmatpush.bf16.msra.mxu0 %v486
  %504 = vmatpush.bf16.msra.mxu0 %v485
  %505 = vmatpush.bf16.msra.mxu0 %v484
  %506 = vmatpush.bf16.msra.mxu0 %v483
  %507 = vmatmul.bf16.gmra.mxu0 %v433
  %v508 = vpop.f32.mrf.mxu0
  %v509 = vadd.f32 0.0, %v508
  %v510 = vpop.f32.mrf.mxu0
  %v511 = vadd.f32 0.0, %v510
  %512 = vmatmul.bf16.gmra.mxu0 %v434
  %v513 = vpop.f32.mrf.mxu0
  %v514 = vadd.f32 0.0, %v513
  %v515 = vpop.f32.mrf.mxu0
  %v516 = vadd.f32 0.0, %v515
  %517 = vdwg.mxu0
  %v534 = vunpack.c.l.b16 %v417
  %v535 = vunpack.c.l.b16 %v418
  %v536 = vunpack.c.l.b16 %v419
  %v537 = vunpack.c.l.b16 %v420
  %v538 = vunpack.c.l.b16 %v421
  %v539 = vunpack.c.l.b16 %v422
  %v540 = vunpack.c.l.b16 %v423
  %v541 = vunpack.c.l.b16 %v424
  %v542 = vunpack.c.l.b16 %v425
  %v543 = vunpack.c.l.b16 %v426
  %v544 = vunpack.c.l.b16 %v427
  %v545 = vunpack.c.l.b16 %v428
  %v546 = vunpack.c.l.b16 %v429
  %v547 = vunpack.c.l.b16 %v430
  %v548 = vunpack.c.l.b16 %v431
  %v549 = vunpack.c.l.b16 %v432
  %v550 = vpack.c.b16 %v535, %v534
  %v551 = vpack.c.b16 %v537, %v536
  %v552 = vpack.c.b16 %v539, %v538
  %v553 = vpack.c.b16 %v541, %v540
  %v554 = vpack.c.b16 %v543, %v542
  %v555 = vpack.c.b16 %v545, %v544
  %v556 = vpack.c.b16 %v547, %v546
  %v557 = vpack.c.b16 %v549, %v548
  %566 = vmatpush.bf16.msra.mxu0 %v557
  %567 = vmatpush.bf16.msra.mxu0 %v556
  %568 = vmatpush.bf16.msra.mxu0 %v555
  %569 = vmatpush.bf16.msra.mxu0 %v554
  %570 = vmatpush.bf16.msra.mxu0 %v553
  %571 = vmatpush.bf16.msra.mxu0 %v552
  %572 = vmatpush.bf16.msra.mxu0 %v551
  %573 = vmatpush.bf16.msra.mxu0 %v550
  %574 = vmatmul.bf16.gmra.mxu0 %v415
  %v575 = vpop.f32.mrf.mxu0
  %v576 = vadd.f32 %v509, %v575
  %v577 = vpop.f32.mrf.mxu0
  %v578 = vadd.f32 %v511, %v577
  %579 = vmatmul.bf16.gmra.mxu0 %v416
  %v580 = vpop.f32.mrf.mxu0
  %v581 = vadd.f32 %v514, %v580
  %v582 = vpop.f32.mrf.mxu0
  %v583 = vadd.f32 %v516, %v582
  %584 = vdwg.mxu0
  %v585 = vpack.c.bf16 %v412, %v411
  %v586 = vpack.c.bf16 %v414, %v413
  %v587 = vld [vmem:[%s2 + $0x80] sm:$0xf]
  %v588 = vld [vmem:[%s2 + $0x84] sm:$0xf]
  %v589 = vld [vmem:[%s2 + $0x88] sm:$0xf]
  %v590 = vld [vmem:[%s2 + $0x8c] sm:$0xf]
  %v591 = vld [vmem:[%s2 + $0x90] sm:$0xf]
  %v592 = vld [vmem:[%s2 + $0x94] sm:$0xf]
  %v593 = vld [vmem:[%s2 + $0x98] sm:$0xf]
  %v594 = vld [vmem:[%s2 + $0x9c] sm:$0xf]
  %v595 = vld [vmem:[%s2 + $0xa0] sm:$0xf]
  %v596 = vld [vmem:[%s2 + $0xa4] sm:$0xf]
  %v597 = vld [vmem:[%s2 + $0xa8] sm:$0xf]
  %v598 = vld [vmem:[%s2 + $0xac] sm:$0xf]
  %v599 = vld [vmem:[%s2 + $0xb0] sm:$0xf]
  %v600 = vld [vmem:[%s2 + $0xb4] sm:$0xf]
  %v601 = vld [vmem:[%s2 + $0xb8] sm:$0xf]
  %v602 = vld [vmem:[%s2 + $0xbc] sm:$0xf]
  %v619 = vunpack.c.l.b16 %v587
  %v620 = vunpack.c.l.b16 %v588
  %v621 = vunpack.c.l.b16 %v589
  %v622 = vunpack.c.l.b16 %v590
  %v623 = vunpack.c.l.b16 %v591
  %v624 = vunpack.c.l.b16 %v592
  %v625 = vunpack.c.l.b16 %v593
  %v626 = vunpack.c.l.b16 %v594
  %v627 = vunpack.c.l.b16 %v595
  %v628 = vunpack.c.l.b16 %v596
  %v629 = vunpack.c.l.b16 %v597
  %v630 = vunpack.c.l.b16 %v598
  %v631 = vunpack.c.l.b16 %v599
  %v632 = vunpack.c.l.b16 %v600
  %v633 = vunpack.c.l.b16 %v601
  %v634 = vunpack.c.l.b16 %v602
  %v635 = vpack.c.b16 %v620, %v619
  %v636 = vpack.c.b16 %v622, %v621
  %v637 = vpack.c.b16 %v624, %v623
  %v638 = vpack.c.b16 %v626, %v625
  %v639 = vpack.c.b16 %v628, %v627
  %v640 = vpack.c.b16 %v630, %v629
  %v641 = vpack.c.b16 %v632, %v631
  %v642 = vpack.c.b16 %v634, %v633
  %651 = vmatpush.bf16.msra.mxu0 %v642
  %652 = vmatpush.bf16.msra.mxu0 %v641
  %653 = vmatpush.bf16.msra.mxu0 %v640
  %654 = vmatpush.bf16.msra.mxu0 %v639
  %655 = vmatpush.bf16.msra.mxu0 %v638
  %656 = vmatpush.bf16.msra.mxu0 %v637
  %657 = vmatpush.bf16.msra.mxu0 %v636
  %658 = vmatpush.bf16.msra.mxu0 %v635
  %659 = vmatmul.bf16.gmra.mxu0 %v585
  %v660 = vpop.f32.mrf.mxu0
  %v661 = vadd.f32 0.0, %v660
  %v662 = vpop.f32.mrf.mxu0
  %v663 = vadd.f32 0.0, %v662
  %664 = vmatmul.bf16.gmra.mxu0 %v586
  %v665 = vpop.f32.mrf.mxu0
  %v666 = vadd.f32 0.0, %v665
  %v667 = vpop.f32.mrf.mxu0
  %v668 = vadd.f32 0.0, %v667
  %669 = vdwg.mxu0
  %v670 = vadd.f32 %v576, %v661
  %v671 = vadd.f32 %v578, %v663
  %v672 = vadd.f32 %v581, %v666
  %v673 = vadd.f32 %v583, %v668
  %v674 = vld [vmem:[%s5] sm:$0x1]
  %v675 = vld [vmem:[%s6] sm:$0x1]
  %v676 = vadd.f32 %v670, %v671
  %v677 = vadd.f32 %v676, %v672
  %v678 = vadd.f32 %v677, %v673
  %v679 = vrot.slane %v678, 4
  %v680 = vadd.f32 %v678, %v679
  %v681 = vrot.slane %v680, 2
  %v682 = vadd.f32 %v680, %v681
  %v683 = vrot.slane %v682, 1
  %v684 = vadd.f32 %v682, %v683
  %v685 = vmul.f32 %v670, %v670
  %v686 = vmul.f32 %v671, %v671
  %v687 = vmul.f32 %v672, %v672
  %v688 = vmul.f32 %v673, %v673
  %v689 = vadd.f32 %v685, %v686
  %v690 = vadd.f32 %v689, %v687
  %v691 = vadd.f32 %v690, %v688
  %v692 = vrot.slane %v691, 4
  %v693 = vadd.f32 %v691, %v692
  %v694 = vrot.slane %v693, 2
  %v695 = vadd.f32 %v693, %v694
  %v696 = vrot.slane %v695, 1
  %v697 = vadd.f32 %v695, %v696
  %698 = vmatpush.msra.mxu0 %v314
  %699 = vmatpush.msra.mxu0 %v313
  %700 = vmatpush.msra.mxu0 %v312
  %701 = vmatpush.msra.mxu0 %v311
  %702 = vmatpush.msra.mxu0 %v310
  %703 = vmatpush.msra.mxu0 %v309
  %704 = vmatpush.msra.mxu0 %v308
  %705 = vmatpush.msra.mxu0 %v307
  %706 = vmatpush.msra.mxu0 %v306
  %707 = vmatpush.msra.mxu0 %v305
  %708 = vmatpush.msra.mxu0 %v304
  %709 = vmatpush.msra.mxu0 %v303
  %710 = vmatpush.msra.mxu0 %v302
  %711 = vmatpush.msra.mxu0 %v301
  %712 = vmatpush.msra.mxu0 %v300
  %713 = vmatpush.msra.mxu0 %v299
  %714 = vmatmul.f32.gmra.mxu0 %v684
  %v715 = vpop.f32.mrf.mxu0
  %v716 = vadd.f32 0.0, %v715
  %717 = vdwg.mxu0
  %v718 = vmul.f32 %v716, 0.001953125
  %719 = vmatpush.msra.mxu0 %v314
  %720 = vmatpush.msra.mxu0 %v313
  %721 = vmatpush.msra.mxu0 %v312
  %722 = vmatpush.msra.mxu0 %v311
  %723 = vmatpush.msra.mxu0 %v310
  %724 = vmatpush.msra.mxu0 %v309
  %725 = vmatpush.msra.mxu0 %v308
  %726 = vmatpush.msra.mxu0 %v307
  %727 = vmatpush.msra.mxu0 %v306
  %728 = vmatpush.msra.mxu0 %v305
  %729 = vmatpush.msra.mxu0 %v304
  %730 = vmatpush.msra.mxu0 %v303
  %731 = vmatpush.msra.mxu0 %v302
  %732 = vmatpush.msra.mxu0 %v301
  %733 = vmatpush.msra.mxu0 %v300
  %734 = vmatpush.msra.mxu0 %v299
  %735 = vmatmul.f32.gmra.mxu0 %v697
  %v736 = vpop.f32.mrf.mxu0
  %v737 = vadd.f32 0.0, %v736
  %738 = vdwg.mxu0
  %v739 = vmul.f32 %v737, 0.001953125
  %v740 = vmul.f32 %v718, %v718
  %v741 = vsub.f32 %v739, %v740
  %v742 = vadd.f32 %v741, 1e-05
  %v743 = vrsqrt.pop %v742
  %v744 = vmul.f32 %v743, %v742
  %v745 = vmul.f32 %v744, %v743
  %v746 = vmul.f32 0.5, %v745
  %v747 = vsub.f32 1.5, %v746
  %v748 = vmul.f32 %v743, %v747
  %vm749 = vweird.f32 %v742
  %vm750 = vweird.f32 %v743
  %vm751 = vmor %vm749, %vm750
  %v752 = vsel %vm751, %v743, %v748
  %v753 = vmul.f32 %v674, %v752
  %v754 = vmul.f32 %v718, %v753
  %v755 = vsub.f32 %v675, %v754
  %v757 = vperm.slane %v753, 0
  %v759 = vmul.f32 %v670, %v757
  %v760 = vmul.f32 %v671, %v757
  %v761 = vmul.f32 %v672, %v757
  %v762 = vmul.f32 %v673, %v757
  %v764 = vperm.slane %v755, 0
  %v766 = vadd.f32 %v759, %v764
  %v767 = vadd.f32 %v760, %v764
  %v768 = vadd.f32 %v761, %v764
  %v769 = vadd.f32 %v762, %v764
  %v770 = vmax.f32 %v766, 0.0
  %v771 = vmax.f32 %v767, 0.0
  %v772 = vmax.f32 %v768, 0.0
  %v773 = vmax.f32 %v769, 0.0
  %774 = vst [vmem:[%s8] sm:$0xff] %v770
  %775 = vst [vmem:[%s8 + $0x8] sm:$0xff] %v771
  %776 = vst [vmem:[%s8 + $0x10] sm:$0xff] %v772
  %777 = vst [vmem:[%s8 + $0x18] sm:$0xff] %v773
  // Predicated region
  $region34: #{double_conv.1} parent=0 // pred_check
    _
  $region35: #{double_conv.1} parent=0 // pred_check_branch
    %779 = sbr.rel (0) target = $region37
  $region36: #{double_conv.1} parent=0 // pred_region
    _
  $region37: #{double_conv.1} parent=0 // pred_fallthru
    _
  // Predicated region
  $region38: #{double_conv.1} parent=0 // pred_check
    _
  $region39: #{double_conv.1} parent=0 // pred_check_branch
    %781 = sbr.rel (0) target = $region41
  $region40: #{double_conv.1} parent=0 // pred_region
    _
  $region41: #{double_conv.1} parent=0 // pred_fallthru
    _

</llo_original>
